<compile_context>
chip_gen: v5e
topology: v5e:2x2
jax: 0.10.0
libtpu: 0.0.40
codegen_flags: <defaults>
</compile_context>

<pallas_src>
import functools
import math

import jax
import jax.numpy as jnp
from jax import lax
from jax.experimental import pallas as pl
from jax.experimental.pallas import tpu as pltpu

_INV_SQRT2 = 1.0 / math.sqrt(2.0)


# ----------------------------------------------------------------------------
# Shared fp32 epilogue: bias + exact GELU + LayerNorm (two-pass variance).
# ----------------------------------------------------------------------------
def _gelu_layernorm_epilogue(acc_f32, b, gamma, beta, *, eps, act_dtype):
    # Match the torch module: the Linear output lives in the activation dtype
    # (no-op for fp32), LayerNorm math is always fp32.
    h = (acc_f32 + b).astype(act_dtype).astype(jnp.float32)
    # Exact (erf) GELU -- torch.nn.GELU default.
    g = 0.5 * h * (1.0 + lax.erf(h * _INV_SQRT2))
    # Two-pass LayerNorm over the lane (feature) axis, fp32.
    mu = jnp.mean(g, axis=-1, keepdims=True)
    d = g - mu
    var = jnp.mean(d * d, axis=-1, keepdims=True)
    y = d * lax.rsqrt(var + eps)
    return y * gamma + beta


# ----------------------------------------------------------------------------
# Kernel A: weight fully resident in VMEM, single row-tiled grid axis.
# ----------------------------------------------------------------------------
def _resident_kernel(x_ref, w_ref, b_ref, gamma_ref, beta_ref, o_ref, *,
                     eps, act_dtype):
    acc = jnp.dot(x_ref[...], w_ref[...], preferred_element_type=jnp.float32)
    y = _gelu_layernorm_epilogue(acc, b_ref[...], gamma_ref[...], beta_ref[...],
                                 eps=eps, act_dtype=act_dtype)
    o_ref[...] = y.astype(o_ref.dtype)


# ----------------------------------------------------------------------------
# Kernel B: K-streaming with fp32 accumulator (large weights / v7x).
# ----------------------------------------------------------------------------
def _streaming_kernel(x_ref, w_ref, b_ref, gamma_ref, beta_ref, o_ref, acc_ref,
                      *, eps, act_dtype):
    k = pl.program_id(1)

    @pl.when(k == 0)
    def _():
        acc_ref[...] = jnp.zeros_like(acc_ref)

    acc_ref[...] += jnp.dot(x_ref[...], w_ref[...],
                            preferred_element_type=jnp.float32)

    @pl.when(k == pl.num_programs(1) - 1)
    def _():
        y = _gelu_layernorm_epilogue(acc_ref[...], b_ref[...], gamma_ref[...],
                                     beta_ref[...], eps=eps, act_dtype=act_dtype)
        o_ref[...] = y.astype(o_ref.dtype)


# ----------------------------------------------------------------------------
# Wrapper helpers
# ----------------------------------------------------------------------------
def _cdiv(a, b):
    return -(-a // b)


def _round_up(a, b):
    return _cdiv(a, b) * b


def _vmem_budget_bytes():
    """Per-core VMEM budget from the actual chip (valid on v5e/v6e/v7x)."""
    try:
        cap = int(pltpu.get_tpu_info().vmem_capacity_bytes)
    except Exception:
        cap = 64 * 1024 * 1024  # conservative fallback, fits every generation
    return max(32 * 1024 * 1024, min(int(0.75 * cap), 100 * 1024 * 1024))


def prepare_linear_params(weight, bias, gamma, beta, *, compute_dtype=None):
    """Hoist the per-call work out of the hot path: transpose the
    PyTorch-layout weight (out, in) -> (in, out) once and stage bias / LN
    params as (1, N) fp32 rows."""
    if compute_dtype is None:
        compute_dtype = weight.dtype
    w_t = jnp.asarray(weight, compute_dtype).T          # (K, N), MXU layout
    n = w_t.shape[1]
    b2 = jnp.asarray(bias, jnp.float32).reshape(1, n)
    g2 = jnp.asarray(gamma, jnp.float32).reshape(1, n)
    be2 = jnp.asarray(beta, jnp.float32).reshape(1, n)
    return w_t, b2, g2, be2


def linear_gelu_layernorm(x, w_t, b2, g2, be2, *, eps=1e-6, max_tile_m=1024,
                          force_streaming=None):
    """Fused Linear + GELU + LayerNorm.

    x:   (..., in_features)
    w_t: (in_features, out_features)   -- pre-transposed (prepare_linear_params)
    b2/g2/be2: (1, out_features) fp32  -- bias / LN weight / LN bias
    """
    orig_shape = x.shape
    K = orig_shape[-1]
    Kw, N = w_t.shape
    assert Kw == K, "weight must be pre-transposed to (in_features, out_features)"

    x2 = x.reshape(-1, K)
    M = x2.shape[0]

    # Same-dtype MXU operands: a mixed bf16 x f32 dot silently becomes an fp32
    # matmul (fraction of peak). prepare_linear_params normally handles this.
    if w_t.dtype != x2.dtype:
        w_t = w_t.astype(x2.dtype)

    xi = jnp.dtype(x2.dtype).itemsize
    wi = jnp.dtype(w_t.dtype).itemsize

    budget = _vmem_budget_bytes()
    weight_bytes = K * N * wi
    param_bytes = 3 * N * 4

    # ---- path selection: fully-resident weight vs. K-streaming -------------
    if force_streaming is None:
        stream = weight_bytes > budget // 3
    else:
        stream = bool(force_streaming)
    tk = 0
    if stream:
        for cand in (2048, 1024, 512, 256, 128):
            if K % cand == 0 and cand < K:
                tk = cand
                break
        if tk == 0:
            # TODO(synk): zero-pad/mask K for non-128-multiple in_features.
            stream = False

    # ---- VMEM-budget-driven row tile ----------------------------------------
    if stream:
        fixed = 2 * tk * N * wi + param_bytes          # double-buffered W slab
        per_row = 2 * tk * xi + 2 * N * xi + 4 * N * 4  # x/out bufs + acc + fp32 temps
    else:
        fixed = weight_bytes + param_bytes             # single-buffered residents
        per_row = 2 * K * xi + 2 * N * xi + 3 * N * 4
    tm = max(8, (max(budget - fixed, 0) // max(per_row, 1)) // 8 * 8)
    tm = min(tm, max_tile_m, _round_up(M, 8))
    if M > 8:
        # >= 2 row steps so ("parallel",) can shard across v7x's 2 TensorCores.
        tm = min(tm, _round_up(_cdiv(M, 2), 8))
    tm = max(8, (tm // 8) * 8)

    grid_m = _cdiv(M, tm)
    act_dtype = x2.dtype
    resident = functools.partial(pl.BlockSpec, pipeline_mode=pl.Buffered(1))

    if stream:
        grid = (grid_m, K // tk)
        in_specs = [
            pl.BlockSpec((tm, tk), lambda i, k: (i, k)),
            pl.BlockSpec((tk, N), lambda i, k: (k, 0)),
            resident((1, N), lambda i, k: (0, 0)),
            resident((1, N), lambda i, k: (0, 0)),
            resident((1, N), lambda i, k: (0, 0)),
        ]
        out_specs = pl.BlockSpec((tm, N), lambda i, k: (i, 0))
        scratch = [pltpu.VMEM((tm, N), jnp.float32)]
        dims = ("parallel", "arbitrary")
        kernel = functools.partial(_streaming_kernel, eps=eps, act_dtype=act_dtype)
    else:
        grid = (grid_m,)
        in_specs = [
            pl.BlockSpec((tm, K), lambda i: (i, 0)),
            resident((K, N), lambda i: (0, 0)),
            resident((1, N), lambda i: (0, 0)),
            resident((1, N), lambda i: (0, 0)),
            resident((1, N), lambda i: (0, 0)),
        ]
        out_specs = pl.BlockSpec((tm, N), lambda i: (i, 0))
        scratch = []
        dims = ("parallel",)
        kernel = functools.partial(_resident_kernel, eps=eps, act_dtype=act_dtype)

    out = pl.pallas_call(
        kernel,
        out_shape=jax.ShapeDtypeStruct((M, N), x.dtype),
        grid_spec=pltpu.PrefetchScalarGridSpec(
            num_scalar_prefetch=0,
            grid=grid,
            in_specs=in_specs,
            out_specs=out_specs,
            scratch_shapes=scratch,
        ),
        compiler_params=pltpu.CompilerParams(
            dimension_semantics=dims,
            vmem_limit_bytes=budget,
        ),
    )(x2, w_t, b2, g2, be2)

    return out.reshape(*orig_shape[:-1], N)


# ----------------------------------------------------------------------------
# Self-test
# ----------------------------------------------------------------------------
if __name__ == "__main__":
    batch, seq = 2, 8
    in_features, out_features = 32, 128

    key = jax.random.PRNGKey(0)
    kx, kw = jax.random.split(key)

    x = jax.random.normal(kx, (batch, seq, in_features), dtype=jnp.float32)

    # Deterministic parameter init mirroring the module's __init__:
    #   nn.init.normal_(linear.weight, std=sqrt(2/in_features)); bias = 0
    #   LayerNorm: weight = 1, bias = 0
    weight = (jax.random.normal(kw, (out_features, in_features), dtype=jnp.float32)
              * math.sqrt(2.0 / in_features))
    bias = jnp.zeros((out_features,), jnp.float32)
    gamma = jnp.ones((out_features,), jnp.float32)
    beta = jnp.zeros((out_features,), jnp.float32)

    def ref(xx, w, b, g, be, eps=1e-6):
        h = jnp.dot(xx.astype(jnp.float32), w.T.astype(jnp.float32),
                    precision=lax.Precision.HIGHEST) + b
        gg = 0.5 * h * (1.0 + lax.erf(h / math.sqrt(2.0)))
        mu = jnp.mean(gg, axis=-1, keepdims=True)
        var = jnp.mean((gg - mu) ** 2, axis=-1, keepdims=True)
        return ((gg - mu) * lax.rsqrt(var + eps) * g + be).astype(xx.dtype)

    # 1) Resident-weight path (auto-selected at these sizes).
    params = prepare_linear_params(weight, bias, gamma, beta)
    y = linear_gelu_layernorm(x, *params, eps=1e-6)
    jax.block_until_ready(y)
    y_ref = ref(x, weight, bias, gamma, beta)
    assert y.shape == y_ref.shape
    assert jnp.allclose(y, y_ref, atol=5e-5, rtol=1e-5), "resident path mismatch"

    # 2) K-streaming path (forced; exercises the large-weight / v7x code path).
    in2 = 256
    kx2, kw2 = jax.random.split(jax.random.PRNGKey(1))
    x_s = jax.random.normal(kx2, (batch, seq, in2), dtype=jnp.float32)
    w_s = (jax.random.normal(kw2, (out_features, in2), dtype=jnp.float32)
           * math.sqrt(2.0 / in2))
    params_s = prepare_linear_params(w_s, bias, gamma, beta)
    y_s = linear_gelu_layernorm(x_s, *params_s, eps=1e-6, force_streaming=True)
    jax.block_until_ready(y_s)
    y_s_ref = ref(x_s, w_s, bias, gamma, beta)
    assert y_s.shape == y_s_ref.shape
    assert jnp.allclose(y_s, y_s_ref, atol=1e-4, rtol=1e-5), "streaming path mismatch"

    print("KERNEL_OK")
</pallas_src>

<mosaic_0001>
module attributes {stable_mosaic.version = 11 : i64} {
  func.func @_resident_kernel(%arg0: i32, %arg1: memref<8x32xf32, #tpu.memory_space<vmem>>, %arg2: memref<32x128xf32, #tpu.memory_space<vmem>>, %arg3: memref<1x128xf32, #tpu.memory_space<vmem>>, %arg4: memref<1x128xf32, #tpu.memory_space<vmem>>, %arg5: memref<1x128xf32, #tpu.memory_space<vmem>>, %arg6: memref<8x128xf32, #tpu.memory_space<vmem>>) attributes {dimension_semantics = [#tpu.dimension_semantics<parallel>], iteration_bounds = array<i64: 2>, scalar_prefetch = 0 : i64, scratch_operands = 0 : i64, tpu.core_type = #tpu.core_type<tc>, window_params = [{transform_indices = @transform_0, window_bounds = array<i64: 8, 32>}, {pipeline_mode = #tpu.pipeline_mode<synchronous>, transform_indices = @transform_1, window_bounds = array<i64: 32, 128>}, {pipeline_mode = #tpu.pipeline_mode<synchronous>, transform_indices = @transform_2, window_bounds = array<i64: 1, 128>}, {pipeline_mode = #tpu.pipeline_mode<synchronous>, transform_indices = @transform_3, window_bounds = array<i64: 1, 128>}, {pipeline_mode = #tpu.pipeline_mode<synchronous>, transform_indices = @transform_4, window_bounds = array<i64: 1, 128>}, {transform_indices = @transform_5, window_bounds = array<i64: 8, 128>}]} {
    %c0 = arith.constant 0 : index
    %c0_0 = arith.constant 0 : index
    %0 = vector.load %arg1[%c0, %c0_0] : memref<8x32xf32, #tpu.memory_space<vmem>>, vector<8x32xf32>
    %c0_1 = arith.constant 0 : index
    %c0_2 = arith.constant 0 : index
    %1 = vector.load %arg2[%c0_1, %c0_2] : memref<32x128xf32, #tpu.memory_space<vmem>>, vector<32x128xf32>
    %cst = arith.constant dense<0.000000e+00> : vector<8x128xf32>
    %2 = tpu.matmul %0, %1, %cst {dimension_numbers = #tpu.dot_dimension_numbers<[1], [0], [0], [1], [0, 0, 1, 1], [], []>} : vector<8x32xf32>, vector<32x128xf32>, vector<8x128xf32> -> vector<8x128xf32>
    %c0_3 = arith.constant 0 : index
    %c0_4 = arith.constant 0 : index
    %3 = vector.load %arg3[%c0_3, %c0_4] : memref<1x128xf32, #tpu.memory_space<vmem>>, vector<1x128xf32>
    %c0_5 = arith.constant 0 : index
    %c0_6 = arith.constant 0 : index
    %4 = vector.load %arg4[%c0_5, %c0_6] : memref<1x128xf32, #tpu.memory_space<vmem>>, vector<1x128xf32>
    %c0_7 = arith.constant 0 : index
    %c0_8 = arith.constant 0 : index
    %5 = vector.load %arg5[%c0_7, %c0_8] : memref<1x128xf32, #tpu.memory_space<vmem>>, vector<1x128xf32>
    %6 = vector.broadcast %3 : vector<1x128xf32> to vector<8x128xf32>
    %7 = arith.addf %2, %6 : vector<8x128xf32>
    %cst_9 = arith.constant 5.000000e-01 : f32
    %8 = vector.broadcast %cst_9 : f32 to vector<8x128xf32>
    %9 = arith.mulf %8, %7 : vector<8x128xf32>
    %cst_10 = arith.constant 0.707106769 : f32
    %10 = vector.broadcast %cst_10 : f32 to vector<8x128xf32>
    %11 = arith.mulf %7, %10 : vector<8x128xf32>
    %12 = math.erf %11 : vector<8x128xf32>
    %cst_11 = arith.constant 1.000000e+00 : f32
    %13 = vector.broadcast %cst_11 : f32 to vector<8x128xf32>
    %14 = arith.addf %13, %12 : vector<8x128xf32>
    %15 = arith.mulf %9, %14 : vector<8x128xf32>
    %cst_12 = arith.constant dense<0.000000e+00> : vector<8xf32>
    %16 = vector.multi_reduction <add>, %15, %cst_12 [1] : vector<8x128xf32> to vector<8xf32>
    %17 = vector.shape_cast %16 : vector<8xf32> to vector<8x1xf32>
    %cst_13 = arith.constant 1.280000e+02 : f32
    %18 = vector.broadcast %cst_13 : f32 to vector<8x1xf32>
    %19 = arith.divf %17, %18 : vector<8x1xf32>
    %20 = vector.broadcast %19 : vector<8x1xf32> to vector<8x128xf32>
    %21 = arith.subf %15, %20 : vector<8x128xf32>
    %22 = arith.mulf %21, %21 : vector<8x128xf32>
    %cst_14 = arith.constant dense<0.000000e+00> : vector<8xf32>
    %23 = vector.multi_reduction <add>, %22, %cst_14 [1] : vector<8x128xf32> to vector<8xf32>
    %24 = vector.shape_cast %23 : vector<8xf32> to vector<8x1xf32>
    %cst_15 = arith.constant 1.280000e+02 : f32
    %25 = vector.broadcast %cst_15 : f32 to vector<8x1xf32>
    %26 = arith.divf %24, %25 : vector<8x1xf32>
    %cst_16 = arith.constant 9.99999997E-7 : f32
    %27 = vector.broadcast %cst_16 : f32 to vector<8x1xf32>
    %28 = arith.addf %26, %27 : vector<8x1xf32>
    %29 = math.rsqrt %28 : vector<8x1xf32>
    %30 = vector.broadcast %29 : vector<8x1xf32> to vector<8x128xf32>
    %31 = arith.mulf %21, %30 : vector<8x128xf32>
    %32 = vector.broadcast %4 : vector<1x128xf32> to vector<8x128xf32>
    %33 = arith.mulf %31, %32 : vector<8x128xf32>
    %34 = vector.broadcast %5 : vector<1x128xf32> to vector<8x128xf32>
    %35 = arith.addf %33, %34 : vector<8x128xf32>
    %c0_17 = arith.constant 0 : index
    %c0_18 = arith.constant 0 : index
    %36 = vector.load %arg6[%c0_17, %c0_18] : memref<8x128xf32, #tpu.memory_space<vmem>>, vector<8x128xf32>
    tpu.vector_store %arg6[%c0_17, %c0_18], %35 {strides = array<i32>} : memref<8x128xf32, #tpu.memory_space<vmem>>, vector<8x128xf32>,
    return
  }
  func.func @transform_0(%arg0: i32) -> (i32, i32) {
    %c0_i32 = arith.constant 0 : i32
    %c0_i32_0 = arith.constant 0 : i32
    return %arg0, %c0_i32 : i32, i32
  }
  func.func @transform_1(%arg0: i32) -> (i32, i32) {
    %c0_i32 = arith.constant 0 : i32
    %c0_i32_0 = arith.constant 0 : i32
    %c0_i32_1 = arith.constant 0 : i32
    return %c0_i32, %c0_i32_0 : i32, i32
  }
  func.func @transform_2(%arg0: i32) -> (i32, i32) {
    %c0_i32 = arith.constant 0 : i32
    %c0_i32_0 = arith.constant 0 : i32
    %c0_i32_1 = arith.constant 0 : i32
    return %c0_i32, %c0_i32_0 : i32, i32
  }
  func.func @transform_3(%arg0: i32) -> (i32, i32) {
    %c0_i32 = arith.constant 0 : i32
    %c0_i32_0 = arith.constant 0 : i32
    %c0_i32_1 = arith.constant 0 : i32
    return %c0_i32, %c0_i32_0 : i32, i32
  }
  func.func @transform_4(%arg0: i32) -> (i32, i32) {
    %c0_i32 = arith.constant 0 : i32
    %c0_i32_0 = arith.constant 0 : i32
    %c0_i32_1 = arith.constant 0 : i32
    return %c0_i32, %c0_i32_0 : i32, i32
  }
  func.func @transform_5(%arg0: i32) -> (i32, i32) {
    %c0_i32 = arith.constant 0 : i32
    %c0_i32_0 = arith.constant 0 : i32
    return %arg0, %c0_i32 : i32, i32
  }
}

</mosaic_0001>

<llo_original>
// kernel: tpu_custom_call.1
$region0: #{tpu_custom_call.1}
  #allocation0 [shape = 'u32[]', space=smem, size = 0x4, offset = 0x4, fixed_abs, tag = 'smem constant byte address 0x4 - core index']
  #allocation1 [shape = 'u32[72,128]{1,0:T(1,128)}', space=vmem, size = 0x9000, scoped, tag = 'internal scratch']
  %s0 = inlined_call_operand.hbm [shape: f32[16,32], index: 0, kind: input, shape index: {}]
  %s1 = inlined_call_operand.hbm [shape: f32[32,128], index: 1, kind: input, shape index: {}]
  %s2 = inlined_call_operand.vmem [shape: f32[1,128], index: 2, kind: input, shape index: {}]
  %s3 = inlined_call_operand.vmem [shape: f32[1,128], index: 3, kind: input, shape index: {}]
  %s4 = inlined_call_operand.vmem [shape: f32[1,128], index: 4, kind: input, shape index: {}]
  %s5 = inlined_call_operand.hbm [shape: f32[16,128], index: 5, kind: output, shape index: {}]
  %s6 = sld [smem:[#allocation0]]
  $region61: #{tpu_custom_call.1} parent=0
    _
  %s8 = ssub.s32 1, %s6
  %s9 = scalar_select 0, %s8, %s6
  $region1: #{tpu_custom_call.1} parent=0
    #allocation2 [shape = 'u8[8192]{0}', space=vmem, size = 0x2000, scoped, tag = 'input window, operand 0']
    #allocation3 [shape = 's32[2]{0}', space=sflag, size = 0x8, scoped, tag = 'scoped memory for tpu_custom_call.1']
    #allocation4 [shape = 's32[2]{0}', space=sflag, size = 0x8, scoped, tag = 'scoped memory for tpu_custom_call.1']
    #allocation5 [shape = 'u8[16384]{0}', space=vmem, size = 0x4000, scoped, tag = 'input window, operand 1, single buffered']
    #allocation6 [shape = 's32[1]{0}', space=sflag, size = 0x4, scoped, tag = 'scoped memory for tpu_custom_call.1']
    #allocation7 [shape = 'u8[8192]{0}', space=vmem, size = 0x2000, scoped, tag = 'output window, operand 0']
    %10 = vsyncpa [#allocation3], 0
    %s11 = scalar_lea.sflag [#allocation3], 1
    %12 = vsyncpa %s11, 0
    %13 = vsyncpa [#allocation6], 0
    %14 = vsyncpa [#allocation4], 0
    %s15 = scalar_lea.sflag [#allocation4], 1
    %16 = vsyncpa %s15, 0
    loop: start=0, step=1, limit=4
    $region2: #{tpu_custom_call.1} parent=1 // loop_pre_header
      _
    $region3: #{tpu_custom_call.1} parent=1 // loop_header
      %s18 = sphi 0, %s22
      %p19 = scmp.ge.s32.totalorder %s18, 4
      %s28 = sphi 0, %s30
      %s31 = sphi 0, %s28
      %s32 = sphi 0, %s31
      %s48 = sphi 0, %s32
      %s52 = sphi 0, %s52
      %s54 = sphi 0, %s52
      %s55 = sphi 0, %s54
      %s69 = sphi 0, %s55
      %s73 = sphi 0, %s73
      %s75 = sphi 0, %s73
      %s76 = sphi 0, %s75
      %s90 = sphi 0, %s76
      %s94 = sphi 0, %s94
      %s96 = sphi 0, %s94
      %s97 = sphi 0, %s96
      %s111 = sphi 0, %s97
      %s115 = sphi 0, %s115
      %s117 = sphi 0, %s115
      %s118 = sphi 0, %s117
      %s132 = sphi 0, %s118
      %s138 = sphi 0, %s140
      %s141 = sphi 0, %s138
      %s142 = sphi 0, %s141
      %s158 = sphi 0, %s142
    $region4: #{tpu_custom_call.1} parent=1 // loop_header_branch
      %21 = sbr.rel (%p19) target = $region8
    $region5: #{tpu_custom_call.1} parent=1 // loop_body
      %s23 = ssub.s32 %s18, 1
      %s24 = ssub.s32 %s18, 2
      %s25 = sadd.s32 %s18, 1
      %s26 = ssub.s32 %s18, %s25
      %p27 = scmp.eq.s32.totalorder %s26, 0
      %s29 = sadd.s32 %s28, 1
      %s30 = scalar_select %p27, %s28, %s29
      %p33 = pneg %p27
      %p34 = scmp.eq.s32.totalorder %s18, 1
      %p35 = por %p33, %p34
      %p36 = scmp.ne.s32.totalorder %s28, %s31
      %p37 = scmp.eq.s32.totalorder %s18, 0
      %p38 = por %p36, %p37
      %p39 = scmp.ne.s32.totalorder %s28, %s31
      %p40 = scmp.eq.s32.totalorder %s23, 1
      %p41 = por %p39, %p40
      %p42 = scmp.ne.s32.totalorder %s31, %s32
      %p43 = scmp.eq.s32.totalorder %s23, 0
      %p44 = por %p42, %p43
      %p45 = scmp.ne.s32.totalorder %s31, %s32
      %p46 = scmp.eq.s32.totalorder %s24, 1
      %p47 = por %p45, %p46
      %p49 = scmp.ne.s32.totalorder %s32, %s48
      %p50 = scmp.eq.s32.totalorder %s24, 0
      %p51 = por %p49, %p50
      %s53 = sadd.s32 %s52, 1
      %p56 = scmp.eq.s32.totalorder %s18, 1
      %p57 = scmp.ne.s32.totalorder %s52, %s54
      %p58 = scmp.eq.s32.totalorder %s18, 0
      %p59 = por %p57, %p58
      %p60 = scmp.ne.s32.totalorder %s52, %s54
      %p61 = scmp.eq.s32.totalorder %s23, 1
      %p62 = por %p60, %p61
      %p63 = scmp.ne.s32.totalorder %s54, %s55
      %p64 = scmp.eq.s32.totalorder %s23, 0
      %p65 = por %p63, %p64
      %p66 = scmp.ne.s32.totalorder %s54, %s55
      %p67 = scmp.eq.s32.totalorder %s24, 1
      %p68 = por %p66, %p67
      %p70 = scmp.ne.s32.totalorder %s55, %s69
      %p71 = scmp.eq.s32.totalorder %s24, 0
      %p72 = por %p70, %p71
      %s74 = sadd.s32 %s73, 1
      %p77 = scmp.eq.s32.totalorder %s18, 1
      %p78 = scmp.ne.s32.totalorder %s73, %s75
      %p79 = scmp.eq.s32.totalorder %s18, 0
      %p80 = por %p78, %p79
      %p81 = scmp.ne.s32.totalorder %s73, %s75
      %p82 = scmp.eq.s32.totalorder %s23, 1
      %p83 = por %p81, %p82
      %p84 = scmp.ne.s32.totalorder %s75, %s76
      %p85 = scmp.eq.s32.totalorder %s23, 0
      %p86 = por %p84, %p85
      %p87 = scmp.ne.s32.totalorder %s75, %s76
      %p88 = scmp.eq.s32.totalorder %s24, 1
      %p89 = por %p87, %p88
      %p91 = scmp.ne.s32.totalorder %s76, %s90
      %p92 = scmp.eq.s32.totalorder %s24, 0
      %p93 = por %p91, %p92
      %s95 = sadd.s32 %s94, 1
      %p98 = scmp.eq.s32.totalorder %s18, 1
      %p99 = scmp.ne.s32.totalorder %s94, %s96
      %p100 = scmp.eq.s32.totalorder %s18, 0
      %p101 = por %p99, %p100
      %p102 = scmp.ne.s32.totalorder %s94, %s96
      %p103 = scmp.eq.s32.totalorder %s23, 1
      %p104 = por %p102, %p103
      %p105 = scmp.ne.s32.totalorder %s96, %s97
      %p106 = scmp.eq.s32.totalorder %s23, 0
      %p107 = por %p105, %p106
      %p108 = scmp.ne.s32.totalorder %s96, %s97
      %p109 = scmp.eq.s32.totalorder %s24, 1
      %p110 = por %p108, %p109
      %p112 = scmp.ne.s32.totalorder %s97, %s111
      %p113 = scmp.eq.s32.totalorder %s24, 0
      %p114 = por %p112, %p113
      %s116 = sadd.s32 %s115, 1
      %p119 = scmp.eq.s32.totalorder %s18, 1
      %p120 = scmp.ne.s32.totalorder %s115, %s117
      %p121 = scmp.eq.s32.totalorder %s18, 0
      %p122 = por %p120, %p121
      %p123 = scmp.ne.s32.totalorder %s115, %s117
      %p124 = scmp.eq.s32.totalorder %s23, 1
      %p125 = por %p123, %p124
      %p126 = scmp.ne.s32.totalorder %s117, %s118
      %p127 = scmp.eq.s32.totalorder %s23, 0
      %p128 = por %p126, %p127
      %p129 = scmp.ne.s32.totalorder %s117, %s118
      %p130 = scmp.eq.s32.totalorder %s24, 1
      %p131 = por %p129, %p130
      %p133 = scmp.ne.s32.totalorder %s118, %s132
      %p134 = scmp.eq.s32.totalorder %s24, 0
      %p135 = por %p133, %p134
      %s136 = ssub.s32 %s18, %s25
      %p137 = scmp.eq.s32.totalorder %s136, 0
      %s139 = sadd.s32 %s138, 1
      %s140 = scalar_select %p137, %s138, %s139
      %p143 = pneg %p137
      %p144 = scmp.eq.s32.totalorder %s18, 1
      %p145 = por %p143, %p144
      %p146 = scmp.ne.s32.totalorder %s138, %s141
      %p147 = scmp.eq.s32.totalorder %s18, 0
      %p148 = por %p146, %p147
      %p149 = scmp.ne.s32.totalorder %s138, %s141
      %p150 = scmp.eq.s32.totalorder %s23, 1
      %p151 = por %p149, %p150
      %p152 = scmp.ne.s32.totalorder %s141, %s142
      %p153 = scmp.eq.s32.totalorder %s23, 0
      %p154 = por %p152, %p153
      %p155 = scmp.ne.s32.totalorder %s141, %s142
      %p156 = scmp.eq.s32.totalorder %s24, 1
      %p157 = por %p155, %p156
      %p159 = scmp.ne.s32.totalorder %s142, %s158
      %p160 = scmp.eq.s32.totalorder %s24, 0
      %p161 = por %p159, %p160
      %p162 = scmp.le.s32.totalorder 1, %s18
      %p163 = scmp.lt.s32.totalorder %s18, 3
      %p164 = pnand %p162, %p163
      %p165 = pneg %p164
      // Predicated region
      $region9: #{tpu_custom_call.1} parent=5 // pred_check
        _
      $region10: #{tpu_custom_call.1} parent=5 // pred_check_branch
        %167 = sbr.rel (%p164) target = $region12
      $region11: #{tpu_custom_call.1} parent=5 // pred_region
        %s168 = ssub.s32 %s18, 1
        // Predicated region
        $region13: #{tpu_custom_call.1} parent=11 // pred_check
          %p169 = pneg %p65
        $region14: #{tpu_custom_call.1} parent=11 // pred_check_branch
          %171 = sbr.rel (%p169) target = $region16
        $region15: #{tpu_custom_call.1} parent=11 // pred_region
          %173 = vsyncadd [#allocation6], 0
          %s174 = sshll.u32 %s1, 4
          %s175 = int_to_ptr.hbm [resolvable:$true] %s174
          %s176 = sshll.u32 [#allocation5], 4
          %s177 = int_to_ptr.vmem [resolvable:$true] %s176
          %182 = dma.hbm_to_vmem [thread:$0]  %s175, 512, %s177, [#allocation6], 128, 128, 8
        $region16: #{tpu_custom_call.1} parent=11 // pred_fallthru
          _
        // Predicated region
        $region17: #{tpu_custom_call.1} parent=11 // pred_check
          %p183 = pneg %p86
        $region18: #{tpu_custom_call.1} parent=11 // pred_check_branch
          %185 = sbr.rel (%p183) target = $region20
        $region19: #{tpu_custom_call.1} parent=11 // pred_region
          _
        $region20: #{tpu_custom_call.1} parent=11 // pred_fallthru
          _
        // Predicated region
        $region21: #{tpu_custom_call.1} parent=11 // pred_check
          %p186 = pneg %p107
        $region22: #{tpu_custom_call.1} parent=11 // pred_check_branch
          %188 = sbr.rel (%p186) target = $region24
        $region23: #{tpu_custom_call.1} parent=11 // pred_region
          _
        $region24: #{tpu_custom_call.1} parent=11 // pred_fallthru
          _
        // Predicated region
        $region25: #{tpu_custom_call.1} parent=11 // pred_check
          %p189 = pneg %p128
        $region26: #{tpu_custom_call.1} parent=11 // pred_check_branch
          %191 = sbr.rel (%p189) target = $region28
        $region27: #{tpu_custom_call.1} parent=11 // pred_region
          _
        $region28: #{tpu_custom_call.1} parent=11 // pred_fallthru
          _
      $region12: #{tpu_custom_call.1} parent=5 // pred_fallthru
        _
      %p192 = scmp.lt.s32.totalorder %s18, 2
      // Predicated region
      $region29: #{tpu_custom_call.1} parent=5 // pred_check
        %p193 = pneg %p192
      $region30: #{tpu_custom_call.1} parent=5 // pred_check_branch
        %195 = sbr.rel (%p193) target = $region32
      $region31: #{tpu_custom_call.1} parent=5 // pred_region
        // Predicated region
        $region33: #{tpu_custom_call.1} parent=31 // pred_check
          %p196 = pneg %p38
        $region34: #{tpu_custom_call.1} parent=31 // pred_check_branch
          %198 = sbr.rel (%p196) target = $region36
        $region35: #{tpu_custom_call.1} parent=31 // pred_region
          %s199 = sand.u32 %s28, 1
          %s200 = scalar_lea.sflag [#allocation3], %s199
          %s201 = sand.u32 %s28, 1
          %s202 = smul.addr %s201, 8
          %s203 = scalar_lea.vmem [#allocation2], %s202
          %205 = vsyncadd %s200, 0
          %s206 = smul.addr %s18, 8
          %s207 = scalar_lea.hbm %s0, %s206
          %s209 = sshll.u32 %s207, 4
          %s210 = int_to_ptr.hbm [resolvable:$true] %s209
          %s211 = sshll.u32 %s203, 4
          %s212 = int_to_ptr.vmem [resolvable:$true] %s211
          %214 = dma.hbm_to_vmem [thread:$0]  %s210, 128, %s212, %s200
        $region36: #{tpu_custom_call.1} parent=31 // pred_fallthru
          _
      $region32: #{tpu_custom_call.1} parent=5 // pred_fallthru
        _
      %p215 = scmp.le.s32.totalorder 1, %s18
      %p216 = scmp.lt.s32.totalorder %s18, 3
      %p217 = pnand %p215, %p216
      %p218 = pneg %p217
      // Predicated region
      $region37: #{tpu_custom_call.1} parent=5 // pred_check
        _
      $region38: #{tpu_custom_call.1} parent=5 // pred_check_branch
        %220 = sbr.rel (%p217) target = $region40
      $region39: #{tpu_custom_call.1} parent=5 // pred_region
        %s221 = ssub.s32 %s18, 1
        %s222 = sand.u32 %s31, 1
        %s223 = scalar_lea.sflag [#allocation3], %s222
        %s224 = sand.u32 %s31, 1
        %s225 = smul.addr %s224, 8
        %s226 = scalar_lea.vmem [#allocation2], %s225
        // Predicated region
        $region41: #{tpu_custom_call.1} parent=39 // pred_check
          %p227 = pneg %p44
        $region42: #{tpu_custom_call.1} parent=39 // pred_check_branch
          %229 = sbr.rel (%p227) target = $region44
        $region43: #{tpu_custom_call.1} parent=39 // pred_region
          %231 = dma.done %s223, 128
        $region44: #{tpu_custom_call.1} parent=39 // pred_fallthru
          _
        // Predicated region
        $region45: #{tpu_custom_call.1} parent=39 // pred_check
          %p232 = pneg %p65
        $region46: #{tpu_custom_call.1} parent=39 // pred_check_branch
          %234 = sbr.rel (%p232) target = $region48
        $region47: #{tpu_custom_call.1} parent=39 // pred_region
          %236 = dma.done [#allocation6], 512
        $region48: #{tpu_custom_call.1} parent=39 // pred_fallthru
          _
        %s237 = sand.u32 %s31, 1
        %s238 = scalar_lea.sflag [#allocation3], %s237
        %s239 = sand.u32 %s31, 1
        %s240 = smul.addr %s239, 8
        %s241 = scalar_lea.vmem [#allocation2], %s240
        %p242 = pneg %p44
        %p243 = pneg %p41
        %p244 = pneg %p65
        %p245 = pneg %p62
        %p246 = pneg %p86
        %p247 = pneg %p83
        %p248 = pneg %p107
        %p249 = pneg %p104
        %p250 = pneg %p128
        %p251 = pneg %p125
        %p252 = pneg %p154
        %p253 = pneg %p151
        %s254 = sand.u32 %s141, 1
        %s255 = scalar_lea.sflag [#allocation4], %s254
        %s256 = sand.u32 %s141, 1
        %s257 = smul.addr %s256, 8
        %s258 = scalar_lea.vmem [#allocation7], %s257
        %v259 = vld [vmem:[%s226] sm:$0xff]
        %v260 = vld [vmem:[#allocation5] sm:$0xff]
        %v261 = vld [vmem:[#allocation5 + $0x8] sm:$0xff]
        %v262 = vld [vmem:[#allocation5 + $0x10] sm:$0xff]
        %v263 = vld [vmem:[#allocation5 + $0x18] sm:$0xff]
        %v264 = vld [vmem:[%s2] sm:$0x1]
        %v265 = vld [vmem:[%s3] sm:$0x1]
        %v266 = vld [vmem:[%s4] sm:$0x1]
        %v268 = vperm.slane %v264, 0
        %vm270 = vcmask 261120
        %v272 = vsel %vm270, %v259, 0
        %274 = vmatpush.msra.mxu0 0.0
        %275 = vmatpush.msra.mxu0 0.0
        %276 = vmatpush.msra.mxu0 0.0
        %277 = vmatpush.msra.mxu0 0.0
        %278 = vmatpush.msra.mxu0 0.0
        %279 = vmatpush.msra.mxu0 0.0
        %280 = vmatpush.msra.mxu0 0.0
        %281 = vmatpush.msra.mxu0 0.0
        %282 = vmatpush.msra.mxu0 0.0
        %283 = vmatpush.msra.mxu0 0.0
        %284 = vmatpush.msra.mxu0 0.0
        %285 = vmatpush.msra.mxu0 0.0
        %286 = vmatpush.msra.mxu0 %v263
        %287 = vmatpush.msra.mxu0 %v262
        %288 = vmatpush.msra.mxu0 %v261
        %289 = vmatpush.msra.mxu0 %v260
        %290 = vmatmul.f32.gmra.mxu0 %v272
        %v291 = vpop.f32.mrf.mxu0
        %v292 = vadd.f32 %v268, %v291
        %293 = vdwg.mxu0
        %v294 = vmul.f32 %v292, 0.5
        %v295 = vmul.f32 %v292, 0.70710677
        %v296 = vmul.f32 %v295, %v295
        %v297 = vmin.f32 16.0, %v296
        %v298 = vmul.f32 %v297, 2.1237322e-06
        %v299 = vadd.f32 %v298, 0.00028619796
        %v300 = vmul.f32 %v297, %v299
        %v301 = vadd.f32 %v300, 0.0036580483
        %v302 = vmul.f32 %v297, %v301
        %v303 = vadd.f32 %v302, 0.05243302
        %v304 = vmul.f32 %v297, %v303
        %v305 = vadd.f32 %v304, 0.18741608
        %v306 = vmul.f32 %v297, %v305
        %v307 = vadd.f32 %v306, 1.1283791
        %v308 = vmul.f32 %v295, %v307
        %v309 = vmul.f32 %v297, 3.8918573e-05
        %v310 = vadd.f32 %v309, 0.001143296
        %v311 = vmul.f32 %v297, %v310
        %v312 = vadd.f32 %v311, 0.014752088
        %v313 = vmul.f32 %v297, %v312
        %v314 = vadd.f32 %v313, 0.112945676
        %v315 = vmul.f32 %v297, %v314
        %v316 = vadd.f32 %v315, 0.4994258
        %v317 = vmul.f32 %v297, %v316
        %v318 = vadd.f32 %v317, 1.0
        %v319 = vrcp.pop %v318
        %v320 = vmul.f32 %v318, %v319
        %v321 = vsub.f32 1.0, %v320
        %v322 = vmul.f32 %v319, %v321
        %v323 = vadd.f32 %v319, %v322
        %vm324 = vweird.f32 %v318
        %vm325 = vweird.f32 %v319
        %vm326 = vmor %vm324, %vm325
        %v327 = vsel %vm326, %v319, %v323
        %v328 = vand.u32 2147483647, %v318
        %vm329 = vcmp.eq.f32.partialorder %v328, 8.507059e+37
        %v330 = vand.u32 %v318, 2147483648
        %v331 = vor.u32 1.1754944e-38, %v330
        %v332 = vsel %vm329, %v331, %v327
        %v333 = vmul.f32 %v308, %v332
        %v334 = vmin.f32 %v333, 1.0
        %v335 = vmax.f32 %v334, -1.0
        %v336 = vadd.f32 %v335, 1.0
        %v337 = vmul.f32 %v294, %v336
        %338 = vadd.xlane.f32.xlu0 %v337
        %v339 = vpop.xlane.xlu0 %338
        %v340 = vrcp.pop 128.0
        %v341 = vmul.f32 128.0, %v340
        %v342 = vsub.f32 1.0, %v341
        %v343 = vmul.f32 %v340, %v342
        %v344 = vadd.f32 %v340, %v343
        %vm345 = vweird.f32 %v340
        %v346 = vsel %vm345, %v340, %v344
        %v347 = vmul.f32 %v339, %v346
        %v348 = vsub.f32 %v337, %v347
        %v349 = vmul.f32 %v348, %v348
        %350 = vadd.xlane.f32.xlu0 %v349
        %v351 = vpop.xlane.xlu0 %350
        %v352 = vmul.f32 %v351, %v346
        %v353 = vadd.f32 %v352, 1e-06
        %v354 = vrsqrt.pop %v353
        %v355 = vmul.f32 %v354, %v353
        %v356 = vmul.f32 %v355, %v354
        %v357 = vmul.f32 0.5, %v356
        %v358 = vsub.f32 1.5, %v357
        %v359 = vmul.f32 %v354, %v358
        %vm360 = vweird.f32 %v353
        %vm361 = vweird.f32 %v354
        %vm362 = vmor %vm360, %vm361
        %v363 = vsel %vm362, %v354, %v359
        %v364 = vmul.f32 %v348, %v363
        %v366 = vperm.slane %v265, 0
        %v368 = vmul.f32 %v364, %v366
        %v370 = vperm.slane %v266, 0
        %v372 = vadd.f32 %v368, %v370
        %373 = vst [vmem:[%s258] sm:$0xff] %v372
        %s374 = sand.u32 %s141, 1
        %s375 = scalar_lea.sflag [#allocation4], %s374
        %s376 = sand.u32 %s141, 1
        %s377 = smul.addr %s376, 8
        %s378 = scalar_lea.vmem [#allocation7], %s377
        // Predicated region
        $region49: #{tpu_custom_call.1} parent=39 // pred_check
          %p379 = pneg %p151
        $region50: #{tpu_custom_call.1} parent=39 // pred_check_branch
          %381 = sbr.rel (%p379) target = $region52
        $region51: #{tpu_custom_call.1} parent=39 // pred_region
          %383 = vsyncadd %s375, 0
          %s384 = smul.addr %s23, 8
          %s385 = scalar_lea.hbm %s5, %s384
          %s387 = sshll.u32 %s378, 4
          %s388 = int_to_ptr.vmem [resolvable:$true] %s387
          %s389 = sshll.u32 %s385, 4
          %s390 = int_to_ptr.hbm [resolvable:$true] %s389
          %392 = dma.vmem_to_hbm [thread:$0]  %s388, 128, %s390, %s375
        $region52: #{tpu_custom_call.1} parent=39 // pred_fallthru
          _
      $region40: #{tpu_custom_call.1} parent=5 // pred_fallthru
        _
      %p393 = scmp.le.s32.totalorder 2, %s18
      // Predicated region
      $region53: #{tpu_custom_call.1} parent=5 // pred_check
        %p394 = pneg %p393
      $region54: #{tpu_custom_call.1} parent=5 // pred_check_branch
        %396 = sbr.rel (%p394) target = $region56
      $region55: #{tpu_custom_call.1} parent=5 // pred_region
        %s397 = ssub.s32 %s18, 2
        // Predicated region
        $region57: #{tpu_custom_call.1} parent=55 // pred_check
          %p398 = pneg %p157
        $region58: #{tpu_custom_call.1} parent=55 // pred_check_branch
          %400 = sbr.rel (%p398) target = $region60
        $region59: #{tpu_custom_call.1} parent=55 // pred_region
          %s401 = sand.u32 %s142, 1
          %s402 = scalar_lea.sflag [#allocation4], %s401
          %s403 = sand.u32 %s142, 1
          %s404 = smul.addr %s403, 8
          %s405 = scalar_lea.vmem [#allocation7], %s404
          %407 = dma.done %s402, 128
        $region60: #{tpu_custom_call.1} parent=55 // pred_fallthru
          _
      $region56: #{tpu_custom_call.1} parent=5 // pred_fallthru
        _
    $region6: #{tpu_custom_call.1} parent=1 // loop_footer
      %s22 = sadd.s32 1, %s18
    $region7: #{tpu_custom_call.1} parent=1 // loop_footer_branch
      %17 = sbr.rel target = $region3
    $region8: #{tpu_custom_call.1} parent=1 // loop_exit
      _
    %408 = vsyncpa [#allocation3], 1
    %s409 = scalar_lea.sflag [#allocation3], 1
    %410 = vsyncpa %s409, 1
    %411 = vsyncpa [#allocation6], 1
    %412 = vsyncpa [#allocation4], 1
    %s413 = scalar_lea.sflag [#allocation4], 1
    %414 = vsyncpa %s413, 1

</llo_original>
